<compile_context>
chip_gen: v7x
topology: tpu7x:2x2x1
jax: 0.10.0
libtpu: 0.0.40
codegen_flags: <defaults>
</compile_context>

<pallas_src>
import functools

import jax
import jax.numpy as jnp
from jax.experimental import pallas as pl
from jax.experimental.pallas import tpu as pltpu


# ------------------------------------------------------------------ kernel ---
def critic_rnn_kernel(
    inp_ref, h_ref,
    w1_ref, b1_ref,
    wgi_ref, wgh_ref, bg_ref,
    wout_ref, bout_ref,
    out_ref,
    *, hid,
):
    f32 = jnp.float32
    x = inp_ref[...]
    h = h_ref[...]

    # fc1 + ReLU
    x1 = jnp.dot(x, w1_ref[...], preferred_element_type=f32) + b1_ref[...]
    x1 = jnp.maximum(x1, 0.0)

    # Fused GRU gates: two MXU pushes -> one lane-dense (TB, 4H) block.
    #   lanes [0 :  H) = gi_r + gh_r (+ bir + bhr)
    #   lanes [H : 2H) = gi_z + gh_z (+ biz + bhz)
    #   lanes [2H: 3H) = gi_n        (+ bin)
    #   lanes [3H: 4H) = gh_n        (+ bhn)   -- bhn must ride with gh_n (r * gh_n)
    g = (jnp.dot(x1, wgi_ref[...], preferred_element_type=f32)
         + jnp.dot(h, wgh_ref[...], preferred_element_type=f32)
         + bg_ref[...])

    r = jax.nn.sigmoid(g[:, 0:hid])
    z = jax.nn.sigmoid(g[:, hid:2 * hid])
    n = jnp.tanh(g[:, 2 * hid:3 * hid] + r * g[:, 3 * hid:4 * hid])
    h_new = (1.0 - z) * n + z * h

    # fc2 fused with an identity pass-through of h_new so the only output is a
    # single lane-dense slab: lane 0 = value, lanes 1:1+H = h_new.
    out_ref[...] = (jnp.dot(h_new, wout_ref[...], preferred_element_type=f32)
                    + bout_ref[...])


# ---------------------------------------------------------------- wrapper ----
def critic_rnn_forward(critic_input, h, packed, hid, *, batch_tile=512):
    n, din = critic_input.shape
    out_w = packed["w_out"].shape[1]

    # Batch tiling: tiles are multiples of 8 sublane rows; pad batch to fit.
    n8 = ((n + 7) // 8) * 8
    tb = min(batch_tile, n8)
    n_pad = ((n + tb - 1) // tb) * tb
    if n_pad != n:
        critic_input = jnp.pad(critic_input, ((0, n_pad - n), (0, 0)))
        h = jnp.pad(h, ((0, n_pad - n), (0, 0)))

    grid = (n_pad // tb,)

    def row_spec(width):
        return pl.BlockSpec((tb, width), lambda i: (i, 0))

    def const_spec(shape):
        # Constant index_map -> weight/bias block stays VMEM-resident.
        return pl.BlockSpec(shape, lambda i: (0, 0))

    operands = (
        critic_input, h,
        packed["w1"], packed["b1"],
        packed["w_gru_i"], packed["w_gru_h"], packed["b_gru"],
        packed["w_out"], packed["b_out"],
    )
    in_specs = [row_spec(din), row_spec(hid)] + [
        const_spec(p.shape) for p in operands[2:]
    ]

    out = pl.pallas_call(
        functools.partial(critic_rnn_kernel, hid=hid),
        out_shape=jax.ShapeDtypeStruct((n_pad, out_w), jnp.float32),
        grid=grid,
        in_specs=in_specs,
        out_specs=row_spec(out_w),
        compiler_params=pltpu.CompilerParams(
            dimension_semantics=("parallel",)),
    )(*operands)

    value = out[:n, 0:1]
    h_new = out[:n, 1:1 + hid]
    return value, h_new


# ------------------------------------------------------------ param init -----
def orthogonal(key, shape, gain=1.0):
    """Deterministic orthogonal init (mirrors nn.init.orthogonal_)."""
    r, c = shape
    a = jax.random.normal(key, (max(r, c), min(r, c)), dtype=jnp.float32)
    q, rr = jnp.linalg.qr(a)
    q = q * jnp.sign(jnp.diag(rr))
    if r < c:
        q = q.T
    return (gain * q[:r, :c]).astype(jnp.float32)


def make_raw_params(key, din, hid):
    """Raw PyTorch-layout parameters.

    The module zero-initializes biases (orthogonal_init); here we use small
    random biases so the bias-folding path is actually exercised by the test.
    The forward-pass semantics are identical either way.
    """
    ks = jax.random.split(key, 8)
    return dict(
        fc1_w=orthogonal(ks[0], (hid, din)),                      # (H, DIN)
        fc1_b=0.1 * jax.random.normal(ks[1], (hid,), jnp.float32),
        gru_w_ih=orthogonal(ks[2], (3 * hid, hid)),               # (3H, H)
        gru_w_hh=orthogonal(ks[3], (3 * hid, hid)),               # (3H, H)
        gru_b_ih=0.1 * jax.random.normal(ks[4], (3 * hid,), jnp.float32),
        gru_b_hh=0.1 * jax.random.normal(ks[5], (3 * hid,), jnp.float32),
        fc2_w=orthogonal(ks[6], (1, hid)),                        # (1, H)
        fc2_b=0.1 * jax.random.normal(ks[7], (1,), jnp.float32),
    )


def pack_params(raw, hid):
    """Fold/pack torch-layout params into the fused kernel layout."""
    H = hid
    w1 = raw["fc1_w"].T                                  # (DIN, H)
    b1 = raw["fc1_b"].reshape(1, H)

    wih_t = raw["gru_w_ih"].T                            # (H, 3H) = [Wir.T|Wiz.T|Win.T]
    whh_t = raw["gru_w_hh"].T                            # (H, 3H) = [Whr.T|Whz.T|Whn.T]
    zeros_hh = jnp.zeros((H, H), jnp.float32)
    w_gru_i = jnp.concatenate([wih_t, zeros_hh], axis=1)                         # (H, 4H)
    w_gru_h = jnp.concatenate([whh_t[:, :2 * H], zeros_hh, whh_t[:, 2 * H:]], 1)  # (H, 4H)

    bih, bhh = raw["gru_b_ih"], raw["gru_b_hh"]
    b_gru = jnp.concatenate(
        [bih[:2 * H] + bhh[:2 * H], bih[2 * H:], bhh[2 * H:]]).reshape(1, 4 * H)

    out_w = 128 * max(1, -(-(1 + H) // 128))             # lane-dense output width
    w_out = jnp.zeros((H, out_w), jnp.float32)
    w_out = w_out.at[:, 0].set(raw["fc2_w"][0])          # lane 0 -> value
    w_out = w_out.at[:, 1:1 + H].set(jnp.eye(H, dtype=jnp.float32))  # lanes 1:1+H -> h_new
    b_out = jnp.zeros((1, out_w), jnp.float32).at[0, 0].set(raw["fc2_b"][0])

    return dict(w1=w1, b1=b1, w_gru_i=w_gru_i, w_gru_h=w_gru_h, b_gru=b_gru,
                w_out=w_out, b_out=b_out)


# ------------------------------------------------------------ reference ------
def reference_forward(x, h, raw, hid):
    """Pure-JAX reference in the original (unfused) PyTorch formulation."""
    H = hid
    x1 = jnp.maximum(x @ raw["fc1_w"].T + raw["fc1_b"], 0.0)
    gi = x1 @ raw["gru_w_ih"].T + raw["gru_b_ih"]
    gh = h @ raw["gru_w_hh"].T + raw["gru_b_hh"]
    r = jax.nn.sigmoid(gi[:, :H] + gh[:, :H])
    z = jax.nn.sigmoid(gi[:, H:2 * H] + gh[:, H:2 * H])
    n = jnp.tanh(gi[:, 2 * H:] + r * gh[:, 2 * H:])
    h_new = (1.0 - z) * n + z * h
    value = h_new @ raw["fc2_w"].T + raw["fc2_b"]
    return value, h_new


# ---------------------------------------------------------------- main -------
if __name__ == "__main__":
    # Small shapes consistent with the module:
    N, DIN, HID = 8, 48, 32   # batch (envs*agents), critic_input_dim, rnn_hidden_dim
    key = jax.random.PRNGKey(0)
    k_in, k_h, k_p = jax.random.split(key, 3)

    critic_input = jax.random.normal(k_in, (N, DIN), dtype=jnp.float32)
    rnn_hidden = jax.random.normal(k_h, (N, HID), dtype=jnp.float32)

    raw = make_raw_params(k_p, DIN, HID)
    packed = pack_params(raw, HID)

    value, h_new = critic_rnn_forward(critic_input, rnn_hidden, packed, HID)
    jax.block_until_ready((value, h_new))

    value_ref, h_ref = reference_forward(critic_input, rnn_hidden, raw, HID)
    assert value.shape == (N, 1) and h_new.shape == (N, HID)
    assert jnp.allclose(value, value_ref, atol=3e-5, rtol=3e-5)
    assert jnp.allclose(h_new, h_ref, atol=3e-5, rtol=3e-5)

    print("KERNEL_OK")
</pallas_src>

<mosaic_0001>
module attributes {stable_mosaic.version = 11 : i64} {
  func.func @critic_rnn_kernel(%arg0: i32, %arg1: memref<8x48xf32, #tpu.memory_space<vmem>>, %arg2: memref<8x32xf32, #tpu.memory_space<vmem>>, %arg3: memref<48x32xf32, #tpu.memory_space<vmem>>, %arg4: memref<1x32xf32, #tpu.memory_space<vmem>>, %arg5: memref<32x128xf32, #tpu.memory_space<vmem>>, %arg6: memref<32x128xf32, #tpu.memory_space<vmem>>, %arg7: memref<1x128xf32, #tpu.memory_space<vmem>>, %arg8: memref<32x128xf32, #tpu.memory_space<vmem>>, %arg9: memref<1x128xf32, #tpu.memory_space<vmem>>, %arg10: memref<8x128xf32, #tpu.memory_space<vmem>>) attributes {dimension_semantics = [#tpu.dimension_semantics<parallel>], iteration_bounds = array<i64: 1>, scalar_prefetch = 0 : i64, scratch_operands = 0 : i64, tpu.core_type = #tpu.core_type<tc>, window_params = [{transform_indices = @transform_0, window_bounds = array<i64: 8, 48>}, {transform_indices = @transform_1, window_bounds = array<i64: 8, 32>}, {pipeline_mode = #tpu.pipeline_mode<synchronous>, transform_indices = @transform_2, window_bounds = array<i64: 48, 32>}, {pipeline_mode = #tpu.pipeline_mode<synchronous>, transform_indices = @transform_3, window_bounds = array<i64: 1, 32>}, {pipeline_mode = #tpu.pipeline_mode<synchronous>, transform_indices = @transform_4, window_bounds = array<i64: 32, 128>}, {pipeline_mode = #tpu.pipeline_mode<synchronous>, transform_indices = @transform_5, window_bounds = array<i64: 32, 128>}, {pipeline_mode = #tpu.pipeline_mode<synchronous>, transform_indices = @transform_6, window_bounds = array<i64: 1, 128>}, {pipeline_mode = #tpu.pipeline_mode<synchronous>, transform_indices = @transform_7, window_bounds = array<i64: 32, 128>}, {pipeline_mode = #tpu.pipeline_mode<synchronous>, transform_indices = @transform_8, window_bounds = array<i64: 1, 128>}, {transform_indices = @transform_9, window_bounds = array<i64: 8, 128>}]} {
    %c0 = arith.constant 0 : index
    %c0_0 = arith.constant 0 : index
    %0 = vector.load %arg1[%c0, %c0_0] : memref<8x48xf32, #tpu.memory_space<vmem>>, vector<8x48xf32>
    %c0_1 = arith.constant 0 : index
    %c0_2 = arith.constant 0 : index
    %1 = vector.load %arg2[%c0_1, %c0_2] : memref<8x32xf32, #tpu.memory_space<vmem>>, vector<8x32xf32>
    %c0_3 = arith.constant 0 : index
    %c0_4 = arith.constant 0 : index
    %2 = vector.load %arg3[%c0_3, %c0_4] : memref<48x32xf32, #tpu.memory_space<vmem>>, vector<48x32xf32>
    %cst = arith.constant dense<0.000000e+00> : vector<8x32xf32>
    %3 = tpu.matmul %0, %2, %cst {dimension_numbers = #tpu.dot_dimension_numbers<[1], [0], [0], [1], [0, 0, 1, 1], [], []>} : vector<8x48xf32>, vector<48x32xf32>, vector<8x32xf32> -> vector<8x32xf32>
    %c0_5 = arith.constant 0 : index
    %c0_6 = arith.constant 0 : index
    %4 = vector.load %arg4[%c0_5, %c0_6] : memref<1x32xf32, #tpu.memory_space<vmem>>, vector<1x32xf32>
    %5 = vector.broadcast %4 : vector<1x32xf32> to vector<8x32xf32>
    %6 = arith.addf %3, %5 : vector<8x32xf32>
    %cst_7 = arith.constant 0.000000e+00 : f32
    %7 = vector.broadcast %cst_7 : f32 to vector<8x32xf32>
    %8 = arith.maximumf %6, %7 : vector<8x32xf32>
    %c0_8 = arith.constant 0 : index
    %c0_9 = arith.constant 0 : index
    %9 = vector.load %arg5[%c0_8, %c0_9] : memref<32x128xf32, #tpu.memory_space<vmem>>, vector<32x128xf32>
    %cst_10 = arith.constant dense<0.000000e+00> : vector<8x128xf32>
    %10 = tpu.matmul %8, %9, %cst_10 {dimension_numbers = #tpu.dot_dimension_numbers<[1], [0], [0], [1], [0, 0, 1, 1], [], []>} : vector<8x32xf32>, vector<32x128xf32>, vector<8x128xf32> -> vector<8x128xf32>
    %c0_11 = arith.constant 0 : index
    %c0_12 = arith.constant 0 : index
    %11 = vector.load %arg6[%c0_11, %c0_12] : memref<32x128xf32, #tpu.memory_space<vmem>>, vector<32x128xf32>
    %cst_13 = arith.constant dense<0.000000e+00> : vector<8x128xf32>
    %12 = tpu.matmul %1, %11, %cst_13 {dimension_numbers = #tpu.dot_dimension_numbers<[1], [0], [0], [1], [0, 0, 1, 1], [], []>} : vector<8x32xf32>, vector<32x128xf32>, vector<8x128xf32> -> vector<8x128xf32>
    %13 = arith.addf %10, %12 : vector<8x128xf32>
    %c0_14 = arith.constant 0 : index
    %c0_15 = arith.constant 0 : index
    %14 = vector.load %arg7[%c0_14, %c0_15] : memref<1x128xf32, #tpu.memory_space<vmem>>, vector<1x128xf32>
    %15 = vector.broadcast %14 : vector<1x128xf32> to vector<8x128xf32>
    %16 = arith.addf %13, %15 : vector<8x128xf32>
    %17 = vector.extract_strided_slice %16 {offsets = [0, 0], sizes = [8, 32], strides = [1, 1]} : vector<8x128xf32> to vector<8x32xf32>
    %18 = arith.negf %17 : vector<8x32xf32>
    %19 = math.exp %18 : vector<8x32xf32>
    %cst_16 = arith.constant 1.000000e+00 : f32
    %20 = vector.broadcast %cst_16 : f32 to vector<8x32xf32>
    %21 = arith.addf %20, %19 : vector<8x32xf32>
    %22 = arith.divf %20, %21 : vector<8x32xf32>
    %23 = vector.extract_strided_slice %16 {offsets = [0, 32], sizes = [8, 32], strides = [1, 1]} : vector<8x128xf32> to vector<8x32xf32>
    %24 = arith.negf %23 : vector<8x32xf32>
    %25 = math.exp %24 : vector<8x32xf32>
    %cst_17 = arith.constant 1.000000e+00 : f32
    %26 = vector.broadcast %cst_17 : f32 to vector<8x32xf32>
    %27 = arith.addf %26, %25 : vector<8x32xf32>
    %28 = arith.divf %26, %27 : vector<8x32xf32>
    %29 = vector.extract_strided_slice %16 {offsets = [0, 64], sizes = [8, 32], strides = [1, 1]} : vector<8x128xf32> to vector<8x32xf32>
    %30 = vector.extract_strided_slice %16 {offsets = [0, 96], sizes = [8, 32], strides = [1, 1]} : vector<8x128xf32> to vector<8x32xf32>
    %31 = arith.mulf %22, %30 : vector<8x32xf32>
    %32 = arith.addf %29, %31 : vector<8x32xf32>
    %33 = math.tanh %32 : vector<8x32xf32>
    %cst_18 = arith.constant 1.000000e+00 : f32
    %34 = vector.broadcast %cst_18 : f32 to vector<8x32xf32>
    %35 = arith.subf %34, %28 : vector<8x32xf32>
    %36 = arith.mulf %35, %33 : vector<8x32xf32>
    %37 = arith.mulf %28, %1 : vector<8x32xf32>
    %38 = arith.addf %36, %37 : vector<8x32xf32>
    %c0_19 = arith.constant 0 : index
    %c0_20 = arith.constant 0 : index
    %39 = vector.load %arg8[%c0_19, %c0_20] : memref<32x128xf32, #tpu.memory_space<vmem>>, vector<32x128xf32>
    %cst_21 = arith.constant dense<0.000000e+00> : vector<8x128xf32>
    %40 = tpu.matmul %38, %39, %cst_21 {dimension_numbers = #tpu.dot_dimension_numbers<[1], [0], [0], [1], [0, 0, 1, 1], [], []>} : vector<8x32xf32>, vector<32x128xf32>, vector<8x128xf32> -> vector<8x128xf32>
    %c0_22 = arith.constant 0 : index
    %c0_23 = arith.constant 0 : index
    %41 = vector.load %arg9[%c0_22, %c0_23] : memref<1x128xf32, #tpu.memory_space<vmem>>, vector<1x128xf32>
    %42 = vector.broadcast %41 : vector<1x128xf32> to vector<8x128xf32>
    %43 = arith.addf %40, %42 : vector<8x128xf32>
    %c0_24 = arith.constant 0 : index
    %c0_25 = arith.constant 0 : index
    %44 = vector.load %arg10[%c0_24, %c0_25] : memref<8x128xf32, #tpu.memory_space<vmem>>, vector<8x128xf32>
    tpu.vector_store %arg10[%c0_24, %c0_25], %43 {strides = array<i32>} : memref<8x128xf32, #tpu.memory_space<vmem>>, vector<8x128xf32>,
    return
  }
  func.func @transform_0(%arg0: i32) -> (i32, i32) {
    %c0_i32 = arith.constant 0 : i32
    %c0_i32_0 = arith.constant 0 : i32
    return %arg0, %c0_i32 : i32, i32
  }
  func.func @transform_1(%arg0: i32) -> (i32, i32) {
    %c0_i32 = arith.constant 0 : i32
    %c0_i32_0 = arith.constant 0 : i32
    return %arg0, %c0_i32 : i32, i32
  }
  func.func @transform_2(%arg0: i32) -> (i32, i32) {
    %c0_i32 = arith.constant 0 : i32
    %c0_i32_0 = arith.constant 0 : i32
    %c0_i32_1 = arith.constant 0 : i32
    return %c0_i32, %c0_i32_0 : i32, i32
  }
  func.func @transform_3(%arg0: i32) -> (i32, i32) {
    %c0_i32 = arith.constant 0 : i32
    %c0_i32_0 = arith.constant 0 : i32
    %c0_i32_1 = arith.constant 0 : i32
    return %c0_i32, %c0_i32_0 : i32, i32
  }
  func.func @transform_4(%arg0: i32) -> (i32, i32) {
    %c0_i32 = arith.constant 0 : i32
    %c0_i32_0 = arith.constant 0 : i32
    %c0_i32_1 = arith.constant 0 : i32
    return %c0_i32, %c0_i32_0 : i32, i32
  }
  func.func @transform_5(%arg0: i32) -> (i32, i32) {
    %c0_i32 = arith.constant 0 : i32
    %c0_i32_0 = arith.constant 0 : i32
    %c0_i32_1 = arith.constant 0 : i32
    return %c0_i32, %c0_i32_0 : i32, i32
  }
  func.func @transform_6(%arg0: i32) -> (i32, i32) {
    %c0_i32 = arith.constant 0 : i32
    %c0_i32_0 = arith.constant 0 : i32
    %c0_i32_1 = arith.constant 0 : i32
    return %c0_i32, %c0_i32_0 : i32, i32
  }
  func.func @transform_7(%arg0: i32) -> (i32, i32) {
    %c0_i32 = arith.constant 0 : i32
    %c0_i32_0 = arith.constant 0 : i32
    %c0_i32_1 = arith.constant 0 : i32
    return %c0_i32, %c0_i32_0 : i32, i32
  }
  func.func @transform_8(%arg0: i32) -> (i32, i32) {
    %c0_i32 = arith.constant 0 : i32
    %c0_i32_0 = arith.constant 0 : i32
    %c0_i32_1 = arith.constant 0 : i32
    return %c0_i32, %c0_i32_0 : i32, i32
  }
  func.func @transform_9(%arg0: i32) -> (i32, i32) {
    %c0_i32 = arith.constant 0 : i32
    %c0_i32_0 = arith.constant 0 : i32
    return %arg0, %c0_i32 : i32, i32
  }
}

</mosaic_0001>

<llo_original>
// kernel: tpu_custom_call.1
$region0: #{tpu_custom_call.1}
  #allocation0 [shape = 'u32[]', space=smem, size = 0x4, offset = 0x4, fixed_abs, tag = 'smem constant byte address 0x4 - core index']
  #allocation1 [shape = 'u32[144,128]{1,0:T(1,128)}', space=vmem, size = 0x12000, scoped, tag = 'internal scratch']
  %s0 = inlined_call_operand.hbm [shape: f32[8,48], index: 0, kind: input, shape index: {}]
  %s1 = inlined_call_operand.hbm [shape: f32[8,32], index: 1, kind: input, shape index: {}]
  %s2 = inlined_call_operand.vmem [shape: f32[48,32], index: 2, kind: input, shape index: {}]
  %s3 = inlined_call_operand.vmem [shape: f32[1,32], index: 3, kind: input, shape index: {}]
  %s4 = inlined_call_operand.vmem [shape: f32[32,128], index: 4, kind: input, shape index: {}]
  %s5 = inlined_call_operand.vmem [shape: f32[32,128], index: 5, kind: input, shape index: {}]
  %s6 = inlined_call_operand.vmem [shape: f32[1,128], index: 6, kind: input, shape index: {}]
  %s7 = inlined_call_operand.vmem [shape: f32[32,128], index: 7, kind: input, shape index: {}]
  %s8 = inlined_call_operand.vmem [shape: f32[1,128], index: 8, kind: input, shape index: {}]
  %s9 = inlined_call_operand.hbm [shape: f32[8,128], index: 9, kind: output, shape index: {}]
  %s10 = sld [smem:[#allocation0]]
  $region54: #{tpu_custom_call.1} parent=0
    _
  %s12 = ssub.s32 1, %s10
  %s13 = scalar_select 0, %s12, %s10
  $region1: #{tpu_custom_call.1} parent=0
    #allocation2 [shape = 'u8[4096]{0}', space=vmem, size = 0x1000, scoped, tag = 'input window, operand 0, single buffered']
    #allocation3 [shape = 's32[1]{0}', space=sflag, size = 0x4, scoped, tag = 'scoped memory for tpu_custom_call.1']
    #allocation4 [shape = 's32[1]{0}', space=sflag, size = 0x4, scoped, tag = 'scoped memory for tpu_custom_call.1']
    #allocation5 [shape = 'u8[4096]{0}', space=vmem, size = 0x1000, scoped, tag = 'input window, operand 1, single buffered']
    #allocation6 [shape = 's32[1]{0}', space=sflag, size = 0x4, scoped, tag = 'scoped memory for tpu_custom_call.1']
    #allocation7 [shape = 'u8[4096]{0}', space=vmem, size = 0x1000, scoped, tag = 'output window, operand 0, single buffered']
    %14 = vsyncpa [#allocation3], 0
    %15 = vsyncpa [#allocation6], 0
    %16 = vsyncpa [#allocation4], 0
    // Predicated region
    $region2: #{tpu_custom_call.1} parent=1 // pred_check
      _
    $region3: #{tpu_custom_call.1} parent=1 // pred_check_branch
      %18 = sbr.rel (0) target = $region5
    $region4: #{tpu_custom_call.1} parent=1 // pred_region
      %s20 = ssub.s32 128, 128
      %21 = vsyncadd [#allocation3], %s20
      %s23 = sshll.u32 [#allocation2], 4
      %s24 = int_to_ptr.vmem [resolvable:$true] %s23
      %26 = dma.hbm_to_vmem [thread:$0]  %s0, 128, %s24, [#allocation3]
    $region5: #{tpu_custom_call.1} parent=1 // pred_fallthru
      _
    // Predicated region
    $region6: #{tpu_custom_call.1} parent=1 // pred_check
      _
    $region7: #{tpu_custom_call.1} parent=1 // pred_check_branch
      %28 = sbr.rel (0) target = $region9
    $region8: #{tpu_custom_call.1} parent=1 // pred_region
      %s30 = ssub.s32 128, 128
      %31 = vsyncadd [#allocation6], %s30
      %s33 = sshll.u32 [#allocation5], 4
      %s34 = int_to_ptr.vmem [resolvable:$true] %s33
      %36 = dma.hbm_to_vmem [thread:$0]  %s1, 128, %s34, [#allocation6]
    $region9: #{tpu_custom_call.1} parent=1 // pred_fallthru
      _
    // Predicated region
    $region10: #{tpu_custom_call.1} parent=1 // pred_check
      _
    $region11: #{tpu_custom_call.1} parent=1 // pred_check_branch
      %38 = sbr.rel (0) target = $region13
    $region12: #{tpu_custom_call.1} parent=1 // pred_region
      _
    $region13: #{tpu_custom_call.1} parent=1 // pred_fallthru
      _
    // Predicated region
    $region14: #{tpu_custom_call.1} parent=1 // pred_check
      _
    $region15: #{tpu_custom_call.1} parent=1 // pred_check_branch
      %40 = sbr.rel (0) target = $region17
    $region16: #{tpu_custom_call.1} parent=1 // pred_region
      _
    $region17: #{tpu_custom_call.1} parent=1 // pred_fallthru
      _
    // Predicated region
    $region18: #{tpu_custom_call.1} parent=1 // pred_check
      _
    $region19: #{tpu_custom_call.1} parent=1 // pred_check_branch
      %42 = sbr.rel (0) target = $region21
    $region20: #{tpu_custom_call.1} parent=1 // pred_region
      _
    $region21: #{tpu_custom_call.1} parent=1 // pred_fallthru
      _
    // Predicated region
    $region22: #{tpu_custom_call.1} parent=1 // pred_check
      _
    $region23: #{tpu_custom_call.1} parent=1 // pred_check_branch
      %44 = sbr.rel (0) target = $region25
    $region24: #{tpu_custom_call.1} parent=1 // pred_region
      _
    $region25: #{tpu_custom_call.1} parent=1 // pred_fallthru
      _
    // Predicated region
    $region26: #{tpu_custom_call.1} parent=1 // pred_check
      _
    $region27: #{tpu_custom_call.1} parent=1 // pred_check_branch
      %46 = sbr.rel (0) target = $region29
    $region28: #{tpu_custom_call.1} parent=1 // pred_region
      _
    $region29: #{tpu_custom_call.1} parent=1 // pred_fallthru
      _
    // Predicated region
    $region30: #{tpu_custom_call.1} parent=1 // pred_check
      _
    $region31: #{tpu_custom_call.1} parent=1 // pred_check_branch
      %48 = sbr.rel (0) target = $region33
    $region32: #{tpu_custom_call.1} parent=1 // pred_region
      _
    $region33: #{tpu_custom_call.1} parent=1 // pred_fallthru
      _
    // Predicated region
    $region34: #{tpu_custom_call.1} parent=1 // pred_check
      _
    $region35: #{tpu_custom_call.1} parent=1 // pred_check_branch
      %50 = sbr.rel (0) target = $region37
    $region36: #{tpu_custom_call.1} parent=1 // pred_region
      _
    $region37: #{tpu_custom_call.1} parent=1 // pred_fallthru
      _
    // Predicated region
    $region38: #{tpu_custom_call.1} parent=1 // pred_check
      _
    $region39: #{tpu_custom_call.1} parent=1 // pred_check_branch
      %52 = sbr.rel (0) target = $region41
    $region40: #{tpu_custom_call.1} parent=1 // pred_region
      %53 = dma.done [#allocation3], 128
    $region41: #{tpu_custom_call.1} parent=1 // pred_fallthru
      _
    // Predicated region
    $region42: #{tpu_custom_call.1} parent=1 // pred_check
      _
    $region43: #{tpu_custom_call.1} parent=1 // pred_check_branch
      %55 = sbr.rel (0) target = $region45
    $region44: #{tpu_custom_call.1} parent=1 // pred_region
      %56 = dma.done [#allocation6], 128
    $region45: #{tpu_custom_call.1} parent=1 // pred_fallthru
      _
    %v57 = vld [vmem:[#allocation2] sm:$0xff]
    %v58 = vld [vmem:[#allocation5] sm:$0xff]
    %v59 = vld [vmem:[%s2] sm:$0xff]
    %v60 = vld [vmem:[%s2 + $0x8] sm:$0xff]
    %v61 = vld [vmem:[%s2 + $0x10] sm:$0xff]
    %v62 = vld [vmem:[%s2 + $0x18] sm:$0xff]
    %v63 = vld [vmem:[%s2 + $0x20] sm:$0xff]
    %v64 = vld [vmem:[%s2 + $0x28] sm:$0xff]
    %v65 = vld [vmem:[%s3] sm:$0x1]
    %v67 = vlaneseq
    %v68 = vshrl.u32 %v67, 7
    %v69 = vsub.s32 0, %v68
    %v70 = vrot.slane %v65, %v69
    %vm72 = vcmask 392192
    %v74 = vsel %vm72, %v57, 0
    %76 = vmatprep.subr.mxu0 0.0
    %77 = vmatpush1.msra.mxu0 %v59
    %78 = vmatprep.subr.mxu0 0.0
    %79 = vmatpush1.msra.mxu0 %v60
    %80 = vmatprep.subr.mxu0 0.0
    %81 = vmatpush1.msra.mxu0 %v61
    %82 = vmatprep.subr.mxu0 0.0
    %83 = vmatpush1.msra.mxu0 %v62
    %84 = vmatprep.subr.mxu0 0.0
    %85 = vmatpush1.msra.mxu0 %v63
    %86 = vmatprep.subr.mxu0 0.0
    %87 = vmatpush1.msra.mxu0 %v64
    %88 = vmatprep.subr.mxu0 0.0
    %89 = vmatpush1.msra.mxu0 0.0
    %90 = vmatprep.subr.mxu0 0.0
    %91 = vmatpush1.msra.mxu0 0.0
    %92 = vmatprep.subr.mxu0 0.0
    %93 = vmatpush1.msra.mxu0 0.0
    %94 = vmatprep.subr.mxu0 0.0
    %95 = vmatpush1.msra.mxu0 0.0
    %96 = vmatprep.subr.mxu0 0.0
    %97 = vmatpush1.msra.mxu0 0.0
    %98 = vmatprep.subr.mxu0 0.0
    %99 = vmatpush1.msra.mxu0 0.0
    %100 = vmatprep.subr.mxu0 0.0
    %101 = vmatpush1.msra.mxu0 0.0
    %102 = vmatprep.subr.mxu0 0.0
    %103 = vmatpush1.msra.mxu0 0.0
    %104 = vmatprep.subr.mxu0 0.0
    %105 = vmatpush1.msra.mxu0 0.0
    %106 = vmatprep.subr.mxu0 0.0
    %107 = vmatpush1.msra.mxu0 0.0
    %108 = vmatprep.subr.mxu0 0.0
    %109 = vmatpush1.msra.mxu0 0.0
    %110 = vmatprep.subr.mxu0 0.0
    %111 = vmatpush1.msra.mxu0 0.0
    %112 = vmatprep.subr.mxu0 0.0
    %113 = vmatpush1.msra.mxu0 0.0
    %114 = vmatprep.subr.mxu0 0.0
    %115 = vmatpush1.msra.mxu0 0.0
    %116 = vmatprep.subr.mxu0 0.0
    %117 = vmatpush1.msra.mxu0 0.0
    %118 = vmatprep.subr.mxu0 0.0
    %119 = vmatpush1.msra.mxu0 0.0
    %120 = vmatprep.subr.mxu0 0.0
    %121 = vmatpush1.msra.mxu0 0.0
    %122 = vmatprep.subr.mxu0 0.0
    %123 = vmatpush1.msra.mxu0 0.0
    %124 = vmatprep.subr.mxu0 0.0
    %125 = vmatpush1.msra.mxu0 0.0
    %126 = vmatprep.subr.mxu0 0.0
    %127 = vmatpush1.msra.mxu0 0.0
    %128 = vmatprep.subr.mxu0 0.0
    %129 = vmatpush1.msra.mxu0 0.0
    %130 = vmatprep.subr.mxu0 0.0
    %131 = vmatpush1.msra.mxu0 0.0
    %132 = vmatprep.subr.mxu0 0.0
    %133 = vmatpush1.msra.mxu0 0.0
    %134 = vmatprep.subr.mxu0 0.0
    %135 = vmatpush1.msra.mxu0 0.0
    %136 = vmatprep.subr.mxu0 0.0
    %137 = vmatpush1.msra.mxu0 0.0
    %138 = vmatprep.subr.mxu0 0.0
    %139 = vmatpush1.msra.mxu0 0.0
    %140 = vmatprep.mubr.f32.mxu0 0.0
    %141 = vmatmul.mubr.f32.gmra.mrb[0].mxu0 %v74
    %v142 = vpop.f32.mrb[0].mxu0
    %v143 = vadd.f32 %v70, %v142
    %v144 = vpop.f32.mrb[0].mxu0
    %145 = vdwg.mxu0
    %v146 = vmax.f32 %v143, 0.0
    %v147 = vld [vmem:[%s4] sm:$0xff]
    %v148 = vld [vmem:[%s4 + $0x8] sm:$0xff]
    %v149 = vld [vmem:[%s4 + $0x10] sm:$0xff]
    %v150 = vld [vmem:[%s4 + $0x18] sm:$0xff]
    %v151 = vld [vmem:[%s5] sm:$0xff]
    %v152 = vld [vmem:[%s5 + $0x8] sm:$0xff]
    %v153 = vld [vmem:[%s5 + $0x10] sm:$0xff]
    %v154 = vld [vmem:[%s5 + $0x18] sm:$0xff]
    %vm155 = vcmask 261120
    %v157 = vsel %vm155, %v58, 0
    %159 = vmatprep.subr.mxu0 0.0
    %160 = vmatpush1.msra.mxu0 %v151
    %161 = vmatprep.subr.mxu0 0.0
    %162 = vmatpush1.msra.mxu0 %v152
    %163 = vmatprep.subr.mxu0 0.0
    %164 = vmatpush1.msra.mxu0 %v153
    %165 = vmatprep.subr.mxu0 0.0
    %166 = vmatpush1.msra.mxu0 %v154
    %167 = vmatprep.subr.mxu0 0.0
    %168 = vmatpush1.msra.mxu0 0.0
    %169 = vmatprep.subr.mxu0 0.0
    %170 = vmatpush1.msra.mxu0 0.0
    %171 = vmatprep.subr.mxu0 0.0
    %172 = vmatpush1.msra.mxu0 0.0
    %173 = vmatprep.subr.mxu0 0.0
    %174 = vmatpush1.msra.mxu0 0.0
    %175 = vmatprep.subr.mxu0 0.0
    %176 = vmatpush1.msra.mxu0 0.0
    %177 = vmatprep.subr.mxu0 0.0
    %178 = vmatpush1.msra.mxu0 0.0
    %179 = vmatprep.subr.mxu0 0.0
    %180 = vmatpush1.msra.mxu0 0.0
    %181 = vmatprep.subr.mxu0 0.0
    %182 = vmatpush1.msra.mxu0 0.0
    %183 = vmatprep.subr.mxu0 0.0
    %184 = vmatpush1.msra.mxu0 0.0
    %185 = vmatprep.subr.mxu0 0.0
    %186 = vmatpush1.msra.mxu0 0.0
    %187 = vmatprep.subr.mxu0 0.0
    %188 = vmatpush1.msra.mxu0 0.0
    %189 = vmatprep.subr.mxu0 0.0
    %190 = vmatpush1.msra.mxu0 0.0
    %191 = vmatprep.subr.mxu0 0.0
    %192 = vmatpush1.msra.mxu0 0.0
    %193 = vmatprep.subr.mxu0 0.0
    %194 = vmatpush1.msra.mxu0 0.0
    %195 = vmatprep.subr.mxu0 0.0
    %196 = vmatpush1.msra.mxu0 0.0
    %197 = vmatprep.subr.mxu0 0.0
    %198 = vmatpush1.msra.mxu0 0.0
    %199 = vmatprep.subr.mxu0 0.0
    %200 = vmatpush1.msra.mxu0 0.0
    %201 = vmatprep.subr.mxu0 0.0
    %202 = vmatpush1.msra.mxu0 0.0
    %203 = vmatprep.subr.mxu0 0.0
    %204 = vmatpush1.msra.mxu0 0.0
    %205 = vmatprep.subr.mxu0 0.0
    %206 = vmatpush1.msra.mxu0 0.0
    %207 = vmatprep.subr.mxu0 0.0
    %208 = vmatpush1.msra.mxu0 0.0
    %209 = vmatprep.subr.mxu0 0.0
    %210 = vmatpush1.msra.mxu0 0.0
    %211 = vmatprep.subr.mxu0 0.0
    %212 = vmatpush1.msra.mxu0 0.0
    %213 = vmatprep.subr.mxu0 0.0
    %214 = vmatpush1.msra.mxu0 0.0
    %215 = vmatprep.subr.mxu0 0.0
    %216 = vmatpush1.msra.mxu0 0.0
    %217 = vmatprep.subr.mxu0 0.0
    %218 = vmatpush1.msra.mxu0 0.0
    %219 = vmatprep.subr.mxu0 0.0
    %220 = vmatpush1.msra.mxu0 0.0
    %221 = vmatprep.subr.mxu0 0.0
    %222 = vmatpush1.msra.mxu0 0.0
    %223 = vmatprep.mubr.f32.mxu0 0.0
    %224 = vmatmul.mubr.f32.gmra.mrb[0].mxu0 %v157
    %v225 = vpop.f32.mrb[0].mxu0
    %v226 = vadd.f32 0.0, %v225
    %v227 = vpop.f32.mrb[0].mxu0
    %228 = vdwg.mxu0
    %v230 = vsel %vm155, %v146, 0
    %232 = vmatprep.subr.mxu0 0.0
    %233 = vmatpush1.msra.mxu0 %v147
    %234 = vmatprep.subr.mxu0 0.0
    %235 = vmatpush1.msra.mxu0 %v148
    %236 = vmatprep.subr.mxu0 0.0
    %237 = vmatpush1.msra.mxu0 %v149
    %238 = vmatprep.subr.mxu0 0.0
    %239 = vmatpush1.msra.mxu0 %v150
    %240 = vmatprep.subr.mxu0 0.0
    %241 = vmatpush1.msra.mxu0 0.0
    %242 = vmatprep.subr.mxu0 0.0
    %243 = vmatpush1.msra.mxu0 0.0
    %244 = vmatprep.subr.mxu0 0.0
    %245 = vmatpush1.msra.mxu0 0.0
    %246 = vmatprep.subr.mxu0 0.0
    %247 = vmatpush1.msra.mxu0 0.0
    %248 = vmatprep.subr.mxu0 0.0
    %249 = vmatpush1.msra.mxu0 0.0
    %250 = vmatprep.subr.mxu0 0.0
    %251 = vmatpush1.msra.mxu0 0.0
    %252 = vmatprep.subr.mxu0 0.0
    %253 = vmatpush1.msra.mxu0 0.0
    %254 = vmatprep.subr.mxu0 0.0
    %255 = vmatpush1.msra.mxu0 0.0
    %256 = vmatprep.subr.mxu0 0.0
    %257 = vmatpush1.msra.mxu0 0.0
    %258 = vmatprep.subr.mxu0 0.0
    %259 = vmatpush1.msra.mxu0 0.0
    %260 = vmatprep.subr.mxu0 0.0
    %261 = vmatpush1.msra.mxu0 0.0
    %262 = vmatprep.subr.mxu0 0.0
    %263 = vmatpush1.msra.mxu0 0.0
    %264 = vmatprep.subr.mxu0 0.0
    %265 = vmatpush1.msra.mxu0 0.0
    %266 = vmatprep.subr.mxu0 0.0
    %267 = vmatpush1.msra.mxu0 0.0
    %268 = vmatprep.subr.mxu0 0.0
    %269 = vmatpush1.msra.mxu0 0.0
    %270 = vmatprep.subr.mxu0 0.0
    %271 = vmatpush1.msra.mxu0 0.0
    %272 = vmatprep.subr.mxu0 0.0
    %273 = vmatpush1.msra.mxu0 0.0
    %274 = vmatprep.subr.mxu0 0.0
    %275 = vmatpush1.msra.mxu0 0.0
    %276 = vmatprep.subr.mxu0 0.0
    %277 = vmatpush1.msra.mxu0 0.0
    %278 = vmatprep.subr.mxu0 0.0
    %279 = vmatpush1.msra.mxu0 0.0
    %280 = vmatprep.subr.mxu0 0.0
    %281 = vmatpush1.msra.mxu0 0.0
    %282 = vmatprep.subr.mxu0 0.0
    %283 = vmatpush1.msra.mxu0 0.0
    %284 = vmatprep.subr.mxu0 0.0
    %285 = vmatpush1.msra.mxu0 0.0
    %286 = vmatprep.subr.mxu0 0.0
    %287 = vmatpush1.msra.mxu0 0.0
    %288 = vmatprep.subr.mxu0 0.0
    %289 = vmatpush1.msra.mxu0 0.0
    %290 = vmatprep.subr.mxu0 0.0
    %291 = vmatpush1.msra.mxu0 0.0
    %292 = vmatprep.subr.mxu0 0.0
    %293 = vmatpush1.msra.mxu0 0.0
    %294 = vmatprep.subr.mxu0 0.0
    %295 = vmatpush1.msra.mxu0 0.0
    %296 = vmatprep.mubr.f32.mxu0 0.0
    %297 = vmatmul.mubr.f32.gmra.mrb[0].mxu0 %v230
    %v298 = vpop.f32.mrb[0].mxu0
    %v299 = vadd.f32 %v226, %v298
    %v300 = vpop.f32.mrb[0].mxu0
    %301 = vdwg.mxu0
    %v302 = vld [vmem:[%s6] sm:$0x1]
    %v304 = vlaneseq
    %v305 = vshrl.u32 %v304, 7
    %v306 = vsub.s32 0, %v305
    %v307 = vrot.slane %v302, %v306
    %v309 = vadd.f32 %v299, %v307
    %v310 = vxor.u32 %v309, 2147483648
    %v311 = vmul.f32 %v310, 1.442695
    %v312 = vpow.pop %v311
    %v313 = vadd.f32 %v312, 1.0
    %v314 = vrcp.pop %v313
    %v315 = vmul.f32 1.0, %v314
    %317 = vrot.lane.b32.xlu0 %v309, 32
    %v318 = vpop.permute.xlu0 %317
    %v320 = vmul.f32 %v315, %v318
    %322 = vrot.lane.b32.xlu0 %v320, 64
    %v323 = vpop.permute.xlu0 %322
    %v325 = vadd.f32 %v309, %v323
    %v326 = vtanh.pop %v325
    %v327 = vsub.f32 1.0, %v315
    %329 = vrot.lane.b32.xlu0 %v326, 96
    %v330 = vpop.permute.xlu0 %329
    %v332 = vmul.f32 %v327, %v330
    %333 = vrot.lane.b32.xlu0 %v58, 32
    %v334 = vpop.permute.xlu0 %333
    %v336 = vmul.f32 %v315, %v334
    %v337 = vadd.f32 %v332, %v336
    %v338 = vld [vmem:[%s7] sm:$0xff]
    %v339 = vld [vmem:[%s7 + $0x8] sm:$0xff]
    %v340 = vld [vmem:[%s7 + $0x10] sm:$0xff]
    %v341 = vld [vmem:[%s7 + $0x18] sm:$0xff]
    %v342 = vld [vmem:[%s8] sm:$0x1]
    %v344 = vlaneseq
    %v345 = vshrl.u32 %v344, 7
    %v346 = vsub.s32 0, %v345
    %v347 = vrot.slane %v342, %v346
    %350 = vrot.lane.b32.xlu0 %v337, 96
    %v351 = vpop.permute.xlu0 %350
    %v352 = vsel %vm155, %v351, 0
    %354 = vmatprep.subr.mxu0 0.0
    %355 = vmatpush1.msra.mxu0 %v338
    %356 = vmatprep.subr.mxu0 0.0
    %357 = vmatpush1.msra.mxu0 %v339
    %358 = vmatprep.subr.mxu0 0.0
    %359 = vmatpush1.msra.mxu0 %v340
    %360 = vmatprep.subr.mxu0 0.0
    %361 = vmatpush1.msra.mxu0 %v341
    %362 = vmatprep.subr.mxu0 0.0
    %363 = vmatpush1.msra.mxu0 0.0
    %364 = vmatprep.subr.mxu0 0.0
    %365 = vmatpush1.msra.mxu0 0.0
    %366 = vmatprep.subr.mxu0 0.0
    %367 = vmatpush1.msra.mxu0 0.0
    %368 = vmatprep.subr.mxu0 0.0
    %369 = vmatpush1.msra.mxu0 0.0
    %370 = vmatprep.subr.mxu0 0.0
    %371 = vmatpush1.msra.mxu0 0.0
    %372 = vmatprep.subr.mxu0 0.0
    %373 = vmatpush1.msra.mxu0 0.0
    %374 = vmatprep.subr.mxu0 0.0
    %375 = vmatpush1.msra.mxu0 0.0
    %376 = vmatprep.subr.mxu0 0.0
    %377 = vmatpush1.msra.mxu0 0.0
    %378 = vmatprep.subr.mxu0 0.0
    %379 = vmatpush1.msra.mxu0 0.0
    %380 = vmatprep.subr.mxu0 0.0
    %381 = vmatpush1.msra.mxu0 0.0
    %382 = vmatprep.subr.mxu0 0.0
    %383 = vmatpush1.msra.mxu0 0.0
    %384 = vmatprep.subr.mxu0 0.0
    %385 = vmatpush1.msra.mxu0 0.0
    %386 = vmatprep.subr.mxu0 0.0
    %387 = vmatpush1.msra.mxu0 0.0
    %388 = vmatprep.subr.mxu0 0.0
    %389 = vmatpush1.msra.mxu0 0.0
    %390 = vmatprep.subr.mxu0 0.0
    %391 = vmatpush1.msra.mxu0 0.0
    %392 = vmatprep.subr.mxu0 0.0
    %393 = vmatpush1.msra.mxu0 0.0
    %394 = vmatprep.subr.mxu0 0.0
    %395 = vmatpush1.msra.mxu0 0.0
    %396 = vmatprep.subr.mxu0 0.0
    %397 = vmatpush1.msra.mxu0 0.0
    %398 = vmatprep.subr.mxu0 0.0
    %399 = vmatpush1.msra.mxu0 0.0
    %400 = vmatprep.subr.mxu0 0.0
    %401 = vmatpush1.msra.mxu0 0.0
    %402 = vmatprep.subr.mxu0 0.0
    %403 = vmatpush1.msra.mxu0 0.0
    %404 = vmatprep.subr.mxu0 0.0
    %405 = vmatpush1.msra.mxu0 0.0
    %406 = vmatprep.subr.mxu0 0.0
    %407 = vmatpush1.msra.mxu0 0.0
    %408 = vmatprep.subr.mxu0 0.0
    %409 = vmatpush1.msra.mxu0 0.0
    %410 = vmatprep.subr.mxu0 0.0
    %411 = vmatpush1.msra.mxu0 0.0
    %412 = vmatprep.subr.mxu0 0.0
    %413 = vmatpush1.msra.mxu0 0.0
    %414 = vmatprep.subr.mxu0 0.0
    %415 = vmatpush1.msra.mxu0 0.0
    %416 = vmatprep.subr.mxu0 0.0
    %417 = vmatpush1.msra.mxu0 0.0
    %418 = vmatprep.mubr.f32.mxu0 0.0
    %419 = vmatmul.mubr.f32.gmra.mrb[0].mxu0 %v352
    %v420 = vpop.f32.mrb[0].mxu0
    %v421 = vadd.f32 %v347, %v420
    %v422 = vpop.f32.mrb[0].mxu0
    %423 = vdwg.mxu0
    %424 = vst [vmem:[#allocation7] sm:$0xff] %v421
    // Predicated region
    $region46: #{tpu_custom_call.1} parent=1 // pred_check
      _
    $region47: #{tpu_custom_call.1} parent=1 // pred_check_branch
      %426 = sbr.rel (0) target = $region49
    $region48: #{tpu_custom_call.1} parent=1 // pred_region
      %s428 = ssub.s32 128, 128
      %429 = vsyncadd [#allocation4], %s428
      %s431 = sshll.u32 [#allocation7], 4
      %s432 = int_to_ptr.vmem [resolvable:$true] %s431
      %434 = dma.vmem_to_hbm [thread:$0]  %s432, 128, %s9, [#allocation4]
    $region49: #{tpu_custom_call.1} parent=1 // pred_fallthru
      _
    // Predicated region
    $region50: #{tpu_custom_call.1} parent=1 // pred_check
      _
    $region51: #{tpu_custom_call.1} parent=1 // pred_check_branch
      %436 = sbr.rel (0) target = $region53
    $region52: #{tpu_custom_call.1} parent=1 // pred_region
      %437 = dma.done [#allocation4], 128
    $region53: #{tpu_custom_call.1} parent=1 // pred_fallthru
      _
    %438 = vsyncpa [#allocation3], 1
    %439 = vsyncpa [#allocation6], 1
    %440 = vsyncpa [#allocation4], 1

</llo_original>
